<compile_context>
chip_gen: v6e
topology: v6e:2x2x1
jax: 0.10.0
libtpu: 0.0.40
codegen_flags: <defaults>
</compile_context>

<pallas_src>
import functools

import jax
import jax.numpy as jnp
from jax.experimental import pallas as pl
from jax.experimental.pallas import tpu as pltpu


def _round_up(x, m):
    return -(-x // m) * m


def mlp_kernel(xl_ref, xe_ref, w1_ref, b1_ref, w2_ref, b2_ref, w3_ref, b3_ref,
               o_ref, *, apply_softmax):
    # xl: (TB, D_local) f32   xe: (TB, D_exp) f32
    # w1: (D_local+D_exp, 128) bf16   w2: (128, 64) bf16   w3: (64, 4) bf16
    # b1/b2/b3: (1, H) f32
    # Fused concat (in-VMEM, never hits HBM) + bf16 MXU operands, f32 accum.
    x = jnp.concatenate([xl_ref[...], xe_ref[...]], axis=-1).astype(jnp.bfloat16)

    h1 = jnp.dot(x, w1_ref[...], preferred_element_type=jnp.float32) + b1_ref[...]
    h1 = jnp.maximum(h1, 0.0).astype(jnp.bfloat16)

    h2 = jnp.dot(h1, w2_ref[...], preferred_element_type=jnp.float32) + b2_ref[...]
    h2 = jnp.maximum(h2, 0.0).astype(jnp.bfloat16)

    out = jnp.dot(h2, w3_ref[...], preferred_element_type=jnp.float32) + b3_ref[...]

    if apply_softmax:
        # Fused softmax epilogue: exp lands on the EUP slot (idle here),
        # reciprocal is the approx EUP op.
        m = jnp.max(out, axis=-1, keepdims=True)
        e = jnp.exp(out - m)
        out = e * pl.reciprocal(jnp.sum(e, axis=-1, keepdims=True), approx=True)

    o_ref[...] = out.astype(o_ref.dtype)


def _choose_tile(B, tb):
    """Pick (TB, B_pad): TB a multiple of 8, B_pad a multiple of TB, and
    (when the batch allows) at least 2 grid steps so v7x's two TCs both work."""
    B8 = _round_up(B, 8)
    if B8 >= 16:
        half = _round_up(-(-B8 // 2), 8)   # ceil(B8/2) rounded up to sublane
        TB = min(tb, half)
    else:
        TB = B8
    TB = max(TB, 8)
    B_pad = _round_up(B8, TB)              # no ragged final block
    return TB, B_pad


def combined_nn_forward(local_feature, expanded_feature, params, *,
                        tb=2048, apply_softmax=False):
    """Forward pass equivalent to CombinedNN.forward.

    If apply_softmax=True the softmax of predict_proba is fused into the
    kernel epilogue.
    """
    w1, b1, w2, b2, w3, b3 = params
    B, D_local = local_feature.shape
    _, D_exp = expanded_feature.shape
    D_in = D_local + D_exp
    H1 = w1.shape[1]
    H2 = w2.shape[1]
    OUT = w3.shape[1]

    TB, B_pad = _choose_tile(B, tb)
    if B_pad != B:
        pad = B_pad - B
        local_feature = jnp.pad(local_feature, ((0, pad), (0, 0)))
        expanded_feature = jnp.pad(expanded_feature, ((0, pad), (0, 0)))
    grid = (B_pad // TB,)

    # bf16 weights (tiny, VMEM-resident); biases stay f32 (added to f32 accum).
    w1b = w1.astype(jnp.bfloat16)
    w2b = w2.astype(jnp.bfloat16)
    w3b = w3.astype(jnp.bfloat16)

    # Batch-tiled arrays move with the grid; weights/biases stay VMEM-resident.
    batch_spec = lambda cols: pl.BlockSpec((TB, cols), lambda i: (i, 0))
    resident = lambda shape: pl.BlockSpec(shape, lambda i: (0, 0))

    flops = 2 * B_pad * (D_in * H1 + H1 * H2 + H2 * OUT)
    bytes_accessed = (4 * B_pad * (D_local + D_exp + OUT)
                      + 2 * (D_in * H1 + H1 * H2 + H2 * OUT)
                      + 4 * (H1 + H2 + OUT))

    kernel = functools.partial(mlp_kernel, apply_softmax=apply_softmax)

    out = pl.pallas_call(
        kernel,
        out_shape=jax.ShapeDtypeStruct((B_pad, OUT), jnp.float32),
        grid=grid,
        in_specs=[
            batch_spec(D_local),        # local_feature
            batch_spec(D_exp),          # expanded_feature
            resident((D_in, H1)),       # w1 (bf16)
            resident((1, H1)),          # b1
            resident((H1, H2)),         # w2 (bf16)
            resident((1, H2)),          # b2
            resident((H2, OUT)),        # w3 (bf16)
            resident((1, OUT)),         # b3
        ],
        out_specs=batch_spec(OUT),
        compiler_params=pltpu.CompilerParams(
            dimension_semantics=("parallel",)),
        cost_estimate=pl.CostEstimate(
            flops=flops,
            transcendentals=(B_pad * OUT if apply_softmax else 0),
            bytes_accessed=bytes_accessed),
    )(local_feature, expanded_feature, w1b, b1, w2b, b2, w3b, b3)

    return out[:B] if B_pad != B else out


def predict_proba(local_feature, expanded_feature, params):
    """Equivalent to CombinedNN.predict_proba (softmax fused into the kernel)."""
    return combined_nn_forward(local_feature, expanded_feature, params,
                               apply_softmax=True)


def init_params(key, d_local, d_exp, h1=128, h2=64, out=4):
    """Init mimicking nn.Linear defaults (uniform +/- 1/sqrt(fan_in)).

    w1 is generated directly for the concatenated [local | expanded] input,
    matching the original concat + single-dot formulation exactly.
    """
    ks = jax.random.split(key, 6)
    d_in = d_local + d_exp

    def lin(kw, kb, fan_in, fan_out):
        bound = 1.0 / jnp.sqrt(jnp.float32(fan_in))
        w = jax.random.uniform(kw, (fan_in, fan_out), jnp.float32, -bound, bound)
        b = jax.random.uniform(kb, (1, fan_out), jnp.float32, -bound, bound)
        return w, b

    w1, b1 = lin(ks[0], ks[1], d_in, h1)
    w2, b2 = lin(ks[2], ks[3], h1, h2)
    w3, b3 = lin(ks[4], ks[5], h2, out)
    return (w1, b1, w2, b2, w3, b3)


def _reference(local_feature, expanded_feature, params):
    w1, b1, w2, b2, w3, b3 = params
    x = jnp.concatenate([local_feature, expanded_feature], axis=1)
    h = jnp.maximum(x @ w1 + b1, 0.0)
    h = jnp.maximum(h @ w2 + b2, 0.0)
    return h @ w3 + b3


if __name__ == "__main__":
    key = jax.random.PRNGKey(0)
    k_local, k_exp, k_params = jax.random.split(key, 3)

    D_LOCAL = 24
    D_EXP = 8

    params = init_params(k_params, D_LOCAL, D_EXP)

    # Small-batch check (single grid step).
    B = 8
    local_feature = jax.random.normal(k_local, (B, D_LOCAL), jnp.float32)
    expanded_feature = jax.random.normal(k_exp, (B, D_EXP), jnp.float32)

    out = combined_nn_forward(local_feature, expanded_feature, params)
    out = jax.block_until_ready(out)
    ref = _reference(local_feature, expanded_feature, params)
    assert out.shape == (B, 4)
    # bf16 MXU operands -> loosened tolerance vs. f32 reference.
    assert jnp.allclose(out, ref, atol=5e-2, rtol=5e-2)

    # Multi-step grid + batch padding check (B not a multiple of the tile);
    # also exercises the >=2-step v7x path.
    B2 = 260
    lf2 = jax.random.normal(jax.random.PRNGKey(1), (B2, D_LOCAL), jnp.float32)
    ef2 = jax.random.normal(jax.random.PRNGKey(2), (B2, D_EXP), jnp.float32)
    out2 = combined_nn_forward(lf2, ef2, params, tb=128)
    out2 = jax.block_until_ready(out2)
    ref2 = _reference(lf2, ef2, params)
    assert out2.shape == (B2, 4)
    assert jnp.allclose(out2, ref2, atol=5e-2, rtol=5e-2)

    # predict_proba with the softmax fused into the kernel epilogue.
    proba = jax.block_until_ready(
        predict_proba(local_feature, expanded_feature, params))
    ref_proba = jax.nn.softmax(ref, axis=-1)
    assert proba.shape == (B, 4)
    assert jnp.allclose(jnp.sum(proba, axis=-1), 1.0, atol=1e-2)
    assert jnp.allclose(proba, ref_proba, atol=2e-2, rtol=2e-2)

    print("KERNEL_OK")
</pallas_src>

<mosaic_0001>
module attributes {stable_mosaic.version = 11 : i64} {
  func.func @mlp_kernel(%arg0: i32, %arg1: memref<8x24xf32, #tpu.memory_space<vmem>>, %arg2: memref<8x8xf32, #tpu.memory_space<vmem>>, %arg3: memref<32x128xbf16, #tpu.memory_space<vmem>>, %arg4: memref<1x128xf32, #tpu.memory_space<vmem>>, %arg5: memref<128x64xbf16, #tpu.memory_space<vmem>>, %arg6: memref<1x64xf32, #tpu.memory_space<vmem>>, %arg7: memref<64x4xbf16, #tpu.memory_space<vmem>>, %arg8: memref<1x4xf32, #tpu.memory_space<vmem>>, %arg9: memref<8x4xf32, #tpu.memory_space<vmem>>) attributes {dimension_semantics = [#tpu.dimension_semantics<parallel>], iteration_bounds = array<i64: 1>, scalar_prefetch = 0 : i64, scratch_operands = 0 : i64, tpu.core_type = #tpu.core_type<tc>, window_params = [{transform_indices = @transform_0, window_bounds = array<i64: 8, 24>}, {transform_indices = @transform_1, window_bounds = array<i64: 8, 8>}, {pipeline_mode = #tpu.pipeline_mode<synchronous>, transform_indices = @transform_2, window_bounds = array<i64: 32, 128>}, {pipeline_mode = #tpu.pipeline_mode<synchronous>, transform_indices = @transform_3, window_bounds = array<i64: 1, 128>}, {pipeline_mode = #tpu.pipeline_mode<synchronous>, transform_indices = @transform_4, window_bounds = array<i64: 128, 64>}, {pipeline_mode = #tpu.pipeline_mode<synchronous>, transform_indices = @transform_5, window_bounds = array<i64: 1, 64>}, {pipeline_mode = #tpu.pipeline_mode<synchronous>, transform_indices = @transform_6, window_bounds = array<i64: 64, 4>}, {pipeline_mode = #tpu.pipeline_mode<synchronous>, transform_indices = @transform_7, window_bounds = array<i64: 1, 4>}, {transform_indices = @transform_8, window_bounds = array<i64: 8, 4>}]} {
    %c0 = arith.constant 0 : index
    %c0_0 = arith.constant 0 : index
    %0 = vector.load %arg1[%c0, %c0_0] : memref<8x24xf32, #tpu.memory_space<vmem>>, vector<8x24xf32>
    %c0_1 = arith.constant 0 : index
    %c0_2 = arith.constant 0 : index
    %1 = vector.load %arg2[%c0_1, %c0_2] : memref<8x8xf32, #tpu.memory_space<vmem>>, vector<8x8xf32>
    %2 = tpu.concatenate %0, %1 in 1 : vector<8x24xf32>, vector<8x8xf32> -> vector<8x32xf32>
    %3 = arith.truncf %2 : vector<8x32xf32> to vector<8x32xbf16>
    %c0_3 = arith.constant 0 : index
    %c0_4 = arith.constant 0 : index
    %4 = vector.load %arg3[%c0_3, %c0_4] : memref<32x128xbf16, #tpu.memory_space<vmem>>, vector<32x128xbf16>
    %cst = arith.constant dense<0.000000e+00> : vector<8x128xf32>
    %5 = tpu.matmul %3, %4, %cst {dimension_numbers = #tpu.dot_dimension_numbers<[1], [0], [0], [1], [0, 0, 1, 1], [], []>} : vector<8x32xbf16>, vector<32x128xbf16>, vector<8x128xf32> -> vector<8x128xf32>
    %c0_5 = arith.constant 0 : index
    %c0_6 = arith.constant 0 : index
    %6 = vector.load %arg4[%c0_5, %c0_6] : memref<1x128xf32, #tpu.memory_space<vmem>>, vector<1x128xf32>
    %7 = vector.broadcast %6 : vector<1x128xf32> to vector<8x128xf32>
    %8 = arith.addf %5, %7 : vector<8x128xf32>
    %cst_7 = arith.constant 0.000000e+00 : f32
    %9 = vector.broadcast %cst_7 : f32 to vector<8x128xf32>
    %10 = arith.maximumf %8, %9 : vector<8x128xf32>
    %11 = arith.truncf %10 : vector<8x128xf32> to vector<8x128xbf16>
    %c0_8 = arith.constant 0 : index
    %c0_9 = arith.constant 0 : index
    %12 = vector.load %arg5[%c0_8, %c0_9] : memref<128x64xbf16, #tpu.memory_space<vmem>>, vector<128x64xbf16>
    %cst_10 = arith.constant dense<0.000000e+00> : vector<8x64xf32>
    %13 = tpu.matmul %11, %12, %cst_10 {dimension_numbers = #tpu.dot_dimension_numbers<[1], [0], [0], [1], [0, 0, 1, 1], [], []>} : vector<8x128xbf16>, vector<128x64xbf16>, vector<8x64xf32> -> vector<8x64xf32>
    %c0_11 = arith.constant 0 : index
    %c0_12 = arith.constant 0 : index
    %14 = vector.load %arg6[%c0_11, %c0_12] : memref<1x64xf32, #tpu.memory_space<vmem>>, vector<1x64xf32>
    %15 = vector.broadcast %14 : vector<1x64xf32> to vector<8x64xf32>
    %16 = arith.addf %13, %15 : vector<8x64xf32>
    %cst_13 = arith.constant 0.000000e+00 : f32
    %17 = vector.broadcast %cst_13 : f32 to vector<8x64xf32>
    %18 = arith.maximumf %16, %17 : vector<8x64xf32>
    %19 = arith.truncf %18 : vector<8x64xf32> to vector<8x64xbf16>
    %c0_14 = arith.constant 0 : index
    %c0_15 = arith.constant 0 : index
    %20 = vector.load %arg7[%c0_14, %c0_15] : memref<64x4xbf16, #tpu.memory_space<vmem>>, vector<64x4xbf16>
    %cst_16 = arith.constant dense<0.000000e+00> : vector<8x4xf32>
    %21 = tpu.matmul %19, %20, %cst_16 {dimension_numbers = #tpu.dot_dimension_numbers<[1], [0], [0], [1], [0, 0, 1, 1], [], []>} : vector<8x64xbf16>, vector<64x4xbf16>, vector<8x4xf32> -> vector<8x4xf32>
    %c0_17 = arith.constant 0 : index
    %c0_18 = arith.constant 0 : index
    %22 = vector.load %arg8[%c0_17, %c0_18] : memref<1x4xf32, #tpu.memory_space<vmem>>, vector<1x4xf32>
    %23 = vector.broadcast %22 : vector<1x4xf32> to vector<8x4xf32>
    %24 = arith.addf %21, %23 : vector<8x4xf32>
    %c0_19 = arith.constant 0 : index
    %c0_20 = arith.constant 0 : index
    %25 = vector.load %arg9[%c0_19, %c0_20] : memref<8x4xf32, #tpu.memory_space<vmem>>, vector<8x4xf32>
    tpu.vector_store %arg9[%c0_19, %c0_20], %24 {strides = array<i32>} : memref<8x4xf32, #tpu.memory_space<vmem>>, vector<8x4xf32>,
    return
  }
  func.func @transform_0(%arg0: i32) -> (i32, i32) {
    %c0_i32 = arith.constant 0 : i32
    %c0_i32_0 = arith.constant 0 : i32
    return %arg0, %c0_i32 : i32, i32
  }
  func.func @transform_1(%arg0: i32) -> (i32, i32) {
    %c0_i32 = arith.constant 0 : i32
    %c0_i32_0 = arith.constant 0 : i32
    return %arg0, %c0_i32 : i32, i32
  }
  func.func @transform_2(%arg0: i32) -> (i32, i32) {
    %c0_i32 = arith.constant 0 : i32
    %c0_i32_0 = arith.constant 0 : i32
    %c0_i32_1 = arith.constant 0 : i32
    return %c0_i32, %c0_i32_0 : i32, i32
  }
  func.func @transform_3(%arg0: i32) -> (i32, i32) {
    %c0_i32 = arith.constant 0 : i32
    %c0_i32_0 = arith.constant 0 : i32
    %c0_i32_1 = arith.constant 0 : i32
    return %c0_i32, %c0_i32_0 : i32, i32
  }
  func.func @transform_4(%arg0: i32) -> (i32, i32) {
    %c0_i32 = arith.constant 0 : i32
    %c0_i32_0 = arith.constant 0 : i32
    %c0_i32_1 = arith.constant 0 : i32
    return %c0_i32, %c0_i32_0 : i32, i32
  }
  func.func @transform_5(%arg0: i32) -> (i32, i32) {
    %c0_i32 = arith.constant 0 : i32
    %c0_i32_0 = arith.constant 0 : i32
    %c0_i32_1 = arith.constant 0 : i32
    return %c0_i32, %c0_i32_0 : i32, i32
  }
  func.func @transform_6(%arg0: i32) -> (i32, i32) {
    %c0_i32 = arith.constant 0 : i32
    %c0_i32_0 = arith.constant 0 : i32
    %c0_i32_1 = arith.constant 0 : i32
    return %c0_i32, %c0_i32_0 : i32, i32
  }
  func.func @transform_7(%arg0: i32) -> (i32, i32) {
    %c0_i32 = arith.constant 0 : i32
    %c0_i32_0 = arith.constant 0 : i32
    %c0_i32_1 = arith.constant 0 : i32
    return %c0_i32, %c0_i32_0 : i32, i32
  }
  func.func @transform_8(%arg0: i32) -> (i32, i32) {
    %c0_i32 = arith.constant 0 : i32
    %c0_i32_0 = arith.constant 0 : i32
    return %arg0, %c0_i32 : i32, i32
  }
}

</mosaic_0001>

<llo_original>
// kernel: tpu_custom_call.1
$region0: #{tpu_custom_call.1}
  #allocation0 [shape = 'u32[]', space=smem, size = 0x4, offset = 0x4, fixed_abs, tag = 'smem constant byte address 0x4 - core index']
  #allocation1 [shape = 'u32[144,128]{1,0:T(1,128)}', space=vmem, size = 0x12000, scoped, tag = 'internal scratch']
  %s0 = inlined_call_operand.vmem [shape: f32[8,24], index: 0, kind: input, shape index: {}]
  %s1 = inlined_call_operand.vmem [shape: f32[8,8], index: 1, kind: input, shape index: {}]
  %s2 = inlined_call_operand.vmem [shape: bf16[32,128], index: 2, kind: input, shape index: {}]
  %s3 = inlined_call_operand.vmem [shape: f32[1,128], index: 3, kind: input, shape index: {}]
  %s4 = inlined_call_operand.vmem [shape: bf16[128,64], index: 4, kind: input, shape index: {}]
  %s5 = inlined_call_operand.vmem [shape: f32[1,64], index: 5, kind: input, shape index: {}]
  %s6 = inlined_call_operand.vmem [shape: bf16[64,4], index: 6, kind: input, shape index: {}]
  %s7 = inlined_call_operand.vmem [shape: f32[1,4], index: 7, kind: input, shape index: {}]
  %s8 = inlined_call_operand.vmem [shape: f32[8,4], index: 8, kind: output, shape index: {}]
  %s9 = sld [smem:[#allocation0]]
  $region42: #{tpu_custom_call.1} parent=0
    _
  %s11 = ssub.s32 1, %s9
  %s12 = scalar_select 0, %s11, %s9
  // Predicated region
  $region2: #{tpu_custom_call.1} parent=0 // pred_check
    _
  $region3: #{tpu_custom_call.1} parent=0 // pred_check_branch
    %14 = sbr.rel (0) target = $region5
  $region4: #{tpu_custom_call.1} parent=0 // pred_region
    _
  $region5: #{tpu_custom_call.1} parent=0 // pred_fallthru
    _
  // Predicated region
  $region6: #{tpu_custom_call.1} parent=0 // pred_check
    _
  $region7: #{tpu_custom_call.1} parent=0 // pred_check_branch
    %16 = sbr.rel (0) target = $region9
  $region8: #{tpu_custom_call.1} parent=0 // pred_region
    _
  $region9: #{tpu_custom_call.1} parent=0 // pred_fallthru
    _
  // Predicated region
  $region10: #{tpu_custom_call.1} parent=0 // pred_check
    _
  $region11: #{tpu_custom_call.1} parent=0 // pred_check_branch
    %18 = sbr.rel (0) target = $region13
  $region12: #{tpu_custom_call.1} parent=0 // pred_region
    _
  $region13: #{tpu_custom_call.1} parent=0 // pred_fallthru
    _
  // Predicated region
  $region14: #{tpu_custom_call.1} parent=0 // pred_check
    _
  $region15: #{tpu_custom_call.1} parent=0 // pred_check_branch
    %20 = sbr.rel (0) target = $region17
  $region16: #{tpu_custom_call.1} parent=0 // pred_region
    _
  $region17: #{tpu_custom_call.1} parent=0 // pred_fallthru
    _
  // Predicated region
  $region18: #{tpu_custom_call.1} parent=0 // pred_check
    _
  $region19: #{tpu_custom_call.1} parent=0 // pred_check_branch
    %22 = sbr.rel (0) target = $region21
  $region20: #{tpu_custom_call.1} parent=0 // pred_region
    _
  $region21: #{tpu_custom_call.1} parent=0 // pred_fallthru
    _
  // Predicated region
  $region22: #{tpu_custom_call.1} parent=0 // pred_check
    _
  $region23: #{tpu_custom_call.1} parent=0 // pred_check_branch
    %24 = sbr.rel (0) target = $region25
  $region24: #{tpu_custom_call.1} parent=0 // pred_region
    _
  $region25: #{tpu_custom_call.1} parent=0 // pred_fallthru
    _
  // Predicated region
  $region26: #{tpu_custom_call.1} parent=0 // pred_check
    _
  $region27: #{tpu_custom_call.1} parent=0 // pred_check_branch
    %26 = sbr.rel (0) target = $region29
  $region28: #{tpu_custom_call.1} parent=0 // pred_region
    _
  $region29: #{tpu_custom_call.1} parent=0 // pred_fallthru
    _
  // Predicated region
  $region30: #{tpu_custom_call.1} parent=0 // pred_check
    _
  $region31: #{tpu_custom_call.1} parent=0 // pred_check_branch
    %28 = sbr.rel (0) target = $region33
  $region32: #{tpu_custom_call.1} parent=0 // pred_region
    _
  $region33: #{tpu_custom_call.1} parent=0 // pred_fallthru
    _
  %v30 = vld [vmem:[%s0] sm:$0xff]
  %v31 = vld [vmem:[%s1] sm:$0xff]
  %33 = vrot.lane.b32.xlu0 %v31, 24
  %v34 = vpop.permute.xlu0 %33
  %vm36 = vcmask 195584
  %v37 = vsel %vm36, %v30, %v34
  %v38 = vpack.c.bf16 %v37, %v37
  %v39 = vld [vmem:[%s2] sm:$0xf]
  %v40 = vld [vmem:[%s2 + $0x4] sm:$0xf]
  %v41 = vld [vmem:[%s2 + $0x8] sm:$0xf]
  %v42 = vld [vmem:[%s2 + $0xc] sm:$0xf]
  %v43 = vld [vmem:[%s3] sm:$0x1]
  %v45 = vlaneseq
  %v46 = vshrl.u32 %v45, 7
  %v47 = vsub.s32 0, %v46
  %v48 = vrot.slane %v43, %v47
  %v54 = vunpack.c.l.b16 %v39
  %v55 = vunpack.c.l.b16 %v40
  %v56 = vunpack.c.l.b16 %v41
  %v57 = vunpack.c.l.b16 %v42
  %v58 = vpack.c.b16 %v55, %v54
  %v59 = vpack.c.b16 %v57, %v56
  %vm62 = vcmask 261120
  %v64 = vsel %vm62, %v38, 0
  %66 = vmatprep.subr.bf16.mxu0 0
  %67 = vmatpush1.bf16.msra.mxu0 0
  %68 = vmatprep.subr.bf16.mxu0 0
  %69 = vmatpush1.bf16.msra.mxu0 0
  %70 = vmatprep.subr.bf16.mxu0 0
  %71 = vmatpush1.bf16.msra.mxu0 0
  %72 = vmatprep.subr.bf16.mxu0 0
  %73 = vmatpush1.bf16.msra.mxu0 0
  %74 = vmatprep.subr.bf16.mxu0 0
  %75 = vmatpush1.bf16.msra.mxu0 0
  %76 = vmatprep.subr.bf16.mxu0 0
  %77 = vmatpush1.bf16.msra.mxu0 0
  %78 = vmatprep.subr.bf16.mxu0 0
  %79 = vmatpush1.bf16.msra.mxu0 %v59
  %80 = vmatprep.subr.bf16.mxu0 0
  %81 = vmatpush1.bf16.msra.mxu0 %v58
  %82 = vmatprep.subr.bf16.mxu0 0
  %83 = vmatpush2.bf16.msra.mxu0 0
  %84 = vmatprep.subr.bf16.mxu0 0
  %85 = vmatpush2.bf16.msra.mxu0 0
  %86 = vmatprep.subr.bf16.mxu0 0
  %87 = vmatpush2.bf16.msra.mxu0 0
  %88 = vmatprep.subr.bf16.mxu0 0
  %89 = vmatpush2.bf16.msra.mxu0 0
  %90 = vmatprep.subr.bf16.mxu0 0
  %91 = vmatpush2.bf16.msra.mxu0 0
  %92 = vmatprep.subr.bf16.mxu0 0
  %93 = vmatpush2.bf16.msra.mxu0 0
  %94 = vmatprep.subr.bf16.mxu0 0
  %95 = vmatpush2.bf16.msra.mxu0 0
  %96 = vmatprep.subr.bf16.mxu0 0
  %97 = vmatpush2.bf16.msra.mxu0 0
  %98 = vmatprep.mubr.bf16.mxu0 0
  %99 = vmatmul.mubr.bf16.gmra.mxu0 %v64
  %v100 = vpop.f32.mrf.mxu0
  %v101 = vadd.f32 %v48, %v100
  %v102 = vpop.f32.mrf.mxu0
  %v103 = vpop.f32.mrf.mxu0
  %v104 = vpop.f32.mrf.mxu0
  %105 = vdwg.mxu0
  %v106 = vmax.f32 %v101, 0.0
  %v107 = vpack.c.bf16 %v106, %v106
  %v108 = vld [vmem:[%s4] sm:$0xf]
  %v109 = vld [vmem:[%s4 + $0x4] sm:$0xf]
  %v110 = vld [vmem:[%s4 + $0x8] sm:$0xf]
  %v111 = vld [vmem:[%s4 + $0xc] sm:$0xf]
  %v112 = vld [vmem:[%s4 + $0x10] sm:$0xf]
  %v113 = vld [vmem:[%s4 + $0x14] sm:$0xf]
  %v114 = vld [vmem:[%s4 + $0x18] sm:$0xf]
  %v115 = vld [vmem:[%s4 + $0x1c] sm:$0xf]
  %v116 = vld [vmem:[%s4 + $0x20] sm:$0xf]
  %v117 = vld [vmem:[%s4 + $0x24] sm:$0xf]
  %v118 = vld [vmem:[%s4 + $0x28] sm:$0xf]
  %v119 = vld [vmem:[%s4 + $0x2c] sm:$0xf]
  %v120 = vld [vmem:[%s4 + $0x30] sm:$0xf]
  %v121 = vld [vmem:[%s4 + $0x34] sm:$0xf]
  %v122 = vld [vmem:[%s4 + $0x38] sm:$0xf]
  %v123 = vld [vmem:[%s4 + $0x3c] sm:$0xf]
  %v124 = vld [vmem:[%s5] sm:$0x1]
  %v126 = vlaneseq
  %v127 = vshrl.u32 %v126, 7
  %v128 = vsub.s32 0, %v127
  %v129 = vrot.slane %v124, %v128
  %v147 = vunpack.c.l.b16 %v108
  %v148 = vunpack.c.l.b16 %v109
  %v149 = vunpack.c.l.b16 %v110
  %v150 = vunpack.c.l.b16 %v111
  %v151 = vunpack.c.l.b16 %v112
  %v152 = vunpack.c.l.b16 %v113
  %v153 = vunpack.c.l.b16 %v114
  %v154 = vunpack.c.l.b16 %v115
  %v155 = vunpack.c.l.b16 %v116
  %v156 = vunpack.c.l.b16 %v117
  %v157 = vunpack.c.l.b16 %v118
  %v158 = vunpack.c.l.b16 %v119
  %v159 = vunpack.c.l.b16 %v120
  %v160 = vunpack.c.l.b16 %v121
  %v161 = vunpack.c.l.b16 %v122
  %v162 = vunpack.c.l.b16 %v123
  %v163 = vpack.c.b16 %v148, %v147
  %v164 = vpack.c.b16 %v150, %v149
  %v165 = vpack.c.b16 %v152, %v151
  %v166 = vpack.c.b16 %v154, %v153
  %v167 = vpack.c.b16 %v156, %v155
  %v168 = vpack.c.b16 %v158, %v157
  %v169 = vpack.c.b16 %v160, %v159
  %v170 = vpack.c.b16 %v162, %v161
  %179 = vmatprep.subr.bf16.mxu0 0
  %180 = vmatpush1.bf16.msra.mxu0 %v170
  %181 = vmatprep.subr.bf16.mxu0 0
  %182 = vmatpush1.bf16.msra.mxu0 %v169
  %183 = vmatprep.subr.bf16.mxu0 0
  %184 = vmatpush1.bf16.msra.mxu0 %v168
  %185 = vmatprep.subr.bf16.mxu0 0
  %186 = vmatpush1.bf16.msra.mxu0 %v167
  %187 = vmatprep.subr.bf16.mxu0 0
  %188 = vmatpush1.bf16.msra.mxu0 %v166
  %189 = vmatprep.subr.bf16.mxu0 0
  %190 = vmatpush1.bf16.msra.mxu0 %v165
  %191 = vmatprep.subr.bf16.mxu0 0
  %192 = vmatpush1.bf16.msra.mxu0 %v164
  %193 = vmatprep.subr.bf16.mxu0 0
  %194 = vmatpush1.bf16.msra.mxu0 %v163
  %195 = vmatprep.subr.bf16.mxu0 0
  %196 = vmatpush2.bf16.msra.mxu0 0
  %197 = vmatprep.subr.bf16.mxu0 0
  %198 = vmatpush2.bf16.msra.mxu0 0
  %199 = vmatprep.subr.bf16.mxu0 0
  %200 = vmatpush2.bf16.msra.mxu0 0
  %201 = vmatprep.subr.bf16.mxu0 0
  %202 = vmatpush2.bf16.msra.mxu0 0
  %203 = vmatprep.subr.bf16.mxu0 0
  %204 = vmatpush2.bf16.msra.mxu0 0
  %205 = vmatprep.subr.bf16.mxu0 0
  %206 = vmatpush2.bf16.msra.mxu0 0
  %207 = vmatprep.subr.bf16.mxu0 0
  %208 = vmatpush2.bf16.msra.mxu0 0
  %209 = vmatprep.subr.bf16.mxu0 0
  %210 = vmatpush2.bf16.msra.mxu0 0
  %211 = vmatprep.mubr.bf16.mxu0 0
  %212 = vmatmul.mubr.bf16.gmra.mxu0 %v107
  %v213 = vpop.f32.mrf.mxu0
  %v214 = vadd.f32 %v129, %v213
  %v215 = vpop.f32.mrf.mxu0
  %v216 = vpop.f32.mrf.mxu0
  %v217 = vpop.f32.mrf.mxu0
  %218 = vdwg.mxu0
  %v219 = vmax.f32 %v214, 0.0
  %v220 = vpack.c.bf16 %v219, %v219
  %v221 = vld [vmem:[%s6] sm:$0xf]
  %v222 = vld [vmem:[%s6 + $0x4] sm:$0xf]
  %v223 = vld [vmem:[%s6 + $0x8] sm:$0xf]
  %v224 = vld [vmem:[%s6 + $0xc] sm:$0xf]
  %v225 = vld [vmem:[%s6 + $0x10] sm:$0xf]
  %v226 = vld [vmem:[%s6 + $0x14] sm:$0xf]
  %v227 = vld [vmem:[%s6 + $0x18] sm:$0xf]
  %v228 = vld [vmem:[%s6 + $0x1c] sm:$0xf]
  %v229 = vld [vmem:[%s7] sm:$0x1]
  %v231 = vlaneseq
  %v232 = vshrl.u32 %v231, 7
  %v233 = vsub.s32 0, %v232
  %v234 = vrot.slane %v229, %v233
  %v244 = vunpack.c.l.b16 %v221
  %v245 = vunpack.c.l.b16 %v222
  %v246 = vunpack.c.l.b16 %v223
  %v247 = vunpack.c.l.b16 %v224
  %v248 = vunpack.c.l.b16 %v225
  %v249 = vunpack.c.l.b16 %v226
  %v250 = vunpack.c.l.b16 %v227
  %v251 = vunpack.c.l.b16 %v228
  %v252 = vpack.c.b16 %v245, %v244
  %v253 = vpack.c.b16 %v247, %v246
  %v254 = vpack.c.b16 %v249, %v248
  %v255 = vpack.c.b16 %v251, %v250
  %vm260 = vcmask 523264
  %v262 = vsel %vm260, %v220, 0
  %264 = vmatprep.subr.bf16.mxu0 0
  %265 = vmatpush1.bf16.msra.mxu0 0
  %266 = vmatprep.subr.bf16.mxu0 0
  %267 = vmatpush1.bf16.msra.mxu0 0
  %268 = vmatprep.subr.bf16.mxu0 0
  %269 = vmatpush1.bf16.msra.mxu0 0
  %270 = vmatprep.subr.bf16.mxu0 0
  %271 = vmatpush1.bf16.msra.mxu0 0
  %272 = vmatprep.subr.bf16.mxu0 0
  %273 = vmatpush1.bf16.msra.mxu0 %v255
  %274 = vmatprep.subr.bf16.mxu0 0
  %275 = vmatpush1.bf16.msra.mxu0 %v254
  %276 = vmatprep.subr.bf16.mxu0 0
  %277 = vmatpush1.bf16.msra.mxu0 %v253
  %278 = vmatprep.subr.bf16.mxu0 0
  %279 = vmatpush1.bf16.msra.mxu0 %v252
  %280 = vmatprep.subr.bf16.mxu0 0
  %281 = vmatpush2.bf16.msra.mxu0 0
  %282 = vmatprep.subr.bf16.mxu0 0
  %283 = vmatpush2.bf16.msra.mxu0 0
  %284 = vmatprep.subr.bf16.mxu0 0
  %285 = vmatpush2.bf16.msra.mxu0 0
  %286 = vmatprep.subr.bf16.mxu0 0
  %287 = vmatpush2.bf16.msra.mxu0 0
  %288 = vmatprep.subr.bf16.mxu0 0
  %289 = vmatpush2.bf16.msra.mxu0 0
  %290 = vmatprep.subr.bf16.mxu0 0
  %291 = vmatpush2.bf16.msra.mxu0 0
  %292 = vmatprep.subr.bf16.mxu0 0
  %293 = vmatpush2.bf16.msra.mxu0 0
  %294 = vmatprep.subr.bf16.mxu0 0
  %295 = vmatpush2.bf16.msra.mxu0 0
  %296 = vmatprep.mubr.bf16.mxu0 0
  %297 = vmatmul.mubr.bf16.gmra.mxu0 %v262
  %v298 = vpop.f32.mrf.mxu0
  %v299 = vadd.f32 %v234, %v298
  %v300 = vpop.f32.mrf.mxu0
  %v301 = vpop.f32.mrf.mxu0
  %v302 = vpop.f32.mrf.mxu0
  %303 = vdwg.mxu0
  %vm304 = vcmask 31744
  %305 = vst.msk [vmem:[%s8] sm:$0xff] %vm304, %v299
  // Predicated region
  $region34: #{tpu_custom_call.1} parent=0 // pred_check
    _
  $region35: #{tpu_custom_call.1} parent=0 // pred_check_branch
    %307 = sbr.rel (0) target = $region37
  $region36: #{tpu_custom_call.1} parent=0 // pred_region
    _
  $region37: #{tpu_custom_call.1} parent=0 // pred_fallthru
    _
  // Predicated region
  $region38: #{tpu_custom_call.1} parent=0 // pred_check
    _
  $region39: #{tpu_custom_call.1} parent=0 // pred_check_branch
    %309 = sbr.rel (0) target = $region41
  $region40: #{tpu_custom_call.1} parent=0 // pred_region
    _
  $region41: #{tpu_custom_call.1} parent=0 // pred_fallthru
    _

</llo_original>
